<compile_context>
chip_gen: v7x
topology: tpu7x:2x2x1
jax: 0.10.0
libtpu: 0.0.40
codegen_flags: <defaults>
</compile_context>

<pallas_src>
import functools

import jax
import jax.numpy as jnp
from jax import lax
from jax.experimental import pallas as pl
from jax.experimental.pallas import tpu as pltpu


def _round_up(x, m):
    return ((x + m - 1) // m) * m


# ----------------------------------------------------------------------------
# Pallas kernel 1: fused 3x3 conv (stride 1, pad 1) + folded BatchNorm + ReLU.
#
# x_ref[dh] : (L, Cin) bf16, L = th*(W+2); row j of the slab is padded pixel
#             (r, c) = (j // (W+2), j % (W+2)) of a th-row band, zero columns
#             at c == 0 and c == W+1, rows pre-shifted by dh.
# For tap (dh, dw) the contribution to padded output row j is
#             partial_dhdw[j + dw - 1]
# which is realized as a sublane roll of the f32 partial product (shift 1-dw).
# The wrap-around rows only land on the border columns, which are don't-care
# and stripped by the wrapper; the border columns of the *input* are genuine
# zero padding, so the interior result is exact.
# ----------------------------------------------------------------------------
def _conv3x3_bn_relu_kernel(x_ref, w_ref, s_ref, t_ref, o_ref):
    L = o_ref.shape[0]
    acc = None
    for dh in range(3):
        x_d = x_ref[dh]                                        # (L, Cin) bf16
        for dw in range(3):
            part = jnp.dot(x_d, w_ref[dh * 3 + dw],
                           preferred_element_type=jnp.float32)  # (L, Cout) f32
            if dw != 1:
                part = pltpu.roll(part, shift=(1 - dw) % L, axis=0)
            acc = part if acc is None else acc + part
    y = acc * s_ref[...] + t_ref[...]                 # folded BN epilogue (f32)
    o_ref[...] = jnp.maximum(y, 0.0).astype(o_ref.dtype)


def _row_tile(H, W, target=512):
    """Rows per grid step: th | H, th*(W+2) % 8 == 0, th*(W+2) <= target."""
    Wp = W + 2
    best = None
    for th in range(1, H + 1):
        if H % th or (th * Wp) % 8 or th * Wp > target:
            continue
        best = th
    return best if best is not None else H


def conv3x3_bn_relu(x, p):
    """x: (B, H, W, Cin) NHWC; p['w']: (9, Cin_p, Cout) bf16; p['s'],p['t']: (1, Cout)."""
    B, H, W, Cin = x.shape
    _, cin_p, Cout = p['w'].shape
    assert Cin <= cin_p
    Wp = W + 2
    # Zero-pad spatially (+channel pad up to the packed weight Cin) and build the
    # 3 dh-shifted copies; XLA fuses pad + stack into a single pass (3x, not 9x,
    # and no transposes).
    xpad = jnp.pad(x.astype(jnp.bfloat16),
                   ((0, 0), (1, 1), (1, 1), (0, cin_p - Cin)))
    xs = jnp.stack([xpad[:, d:d + H] for d in range(3)], axis=0)
    xs = xs.reshape(3, B, H * Wp, cin_p)                  # (3, B, H*(W+2), Cin)

    th = _row_tile(H, W)
    L = th * Wp
    out = pl.pallas_call(
        _conv3x3_bn_relu_kernel,
        out_shape=jax.ShapeDtypeStruct((B, H * Wp, Cout), jnp.bfloat16),
        grid_spec=pltpu.PrefetchScalarGridSpec(
            num_scalar_prefetch=0,
            grid=(B, H // th),
            in_specs=[
                pl.BlockSpec((3, None, L, cin_p), lambda b, i: (0, b, i, 0)),
                pl.BlockSpec((9, cin_p, Cout), lambda b, i: (0, 0, 0)),
                pl.BlockSpec((1, Cout), lambda b, i: (0, 0)),
                pl.BlockSpec((1, Cout), lambda b, i: (0, 0)),
            ],
            out_specs=pl.BlockSpec((None, L, Cout), lambda b, i: (b, i, 0)),
        ),
        compiler_params=pltpu.CompilerParams(
            dimension_semantics=("parallel", "parallel")),
    )(xs, p['w'], p['s'], p['t'])
    # strip the don't-care W-border columns -> clean NHWC
    return out.reshape(B, H, Wp, Cout)[:, :, 1:W + 1, :]


# ----------------------------------------------------------------------------
# Pallas kernel 2: tiled linear  y = act(x @ w + b), bf16 MXU, f32 accumulator.
# ----------------------------------------------------------------------------
def _linear_bias_kernel(x_ref, w_ref, b_ref, o_ref, acc_ref, *, relu):
    @pl.when(pl.program_id(2) == 0)
    def _init():
        acc_ref[...] = jnp.zeros_like(acc_ref)

    acc_ref[...] += jnp.dot(x_ref[...], w_ref[...],
                            preferred_element_type=jnp.float32)

    @pl.when(pl.program_id(2) == pl.num_programs(2) - 1)
    def _finish():
        y = acc_ref[...] + b_ref[...]
        if relu:
            y = jnp.maximum(y, 0.0)
        o_ref[...] = y.astype(o_ref.dtype)


def _pick_tile(dim, cap):
    """Largest multiple of 128 <= cap dividing `dim` (dim is a multiple of 128)."""
    t = min(cap, dim)
    while dim % t:
        t -= 128
    return t


def linear(x, p, *, relu, out_dtype):
    """Weights are pre-packed at init: p['w'] (Kp, Np) bf16, p['b'] (1, Np) f32."""
    M, K = x.shape
    Kp, Np = p['w'].shape
    tm = _round_up(min(M, 256), 8)
    tn = _pick_tile(Np, 1024)
    tk = _pick_tile(Kp, 2048)
    Mp = _round_up(M, tm)
    xp = jnp.pad(x.astype(jnp.bfloat16), ((0, Mp - M), (0, Kp - K)))

    out = pl.pallas_call(
        functools.partial(_linear_bias_kernel, relu=relu),
        out_shape=jax.ShapeDtypeStruct((Mp, Np), out_dtype),
        grid_spec=pltpu.PrefetchScalarGridSpec(
            num_scalar_prefetch=0,
            grid=(Mp // tm, Np // tn, Kp // tk),
            in_specs=[
                pl.BlockSpec((tm, tk), lambda i, j, k: (i, k)),
                pl.BlockSpec((tk, tn), lambda i, j, k: (k, j)),
                pl.BlockSpec((1, tn), lambda i, j, k: (0, j)),
            ],
            out_specs=pl.BlockSpec((tm, tn), lambda i, j, k: (i, j)),
            scratch_shapes=[pltpu.VMEM((tm, tn), jnp.float32)],
        ),
        compiler_params=pltpu.CompilerParams(
            dimension_semantics=("parallel", "parallel", "arbitrary")),
    )(xp, p['w'], p['b'])
    return out[:M]


# ----------------------------------------------------------------------------
# Pallas kernel 3: binary vector-quantize (codebook {0,1}) + commitment losses.
# ----------------------------------------------------------------------------
def _bin_quantize_kernel(x_ref, p_ref, q_ref, pq_ref, loss_ref):
    x = x_ref[...]
    p = p_ref[...]
    q = jnp.where(x > 0.5, 1.0, 0.0).astype(jnp.float32)
    pq = jnp.where(p > 0.5, 1.0, 0.0).astype(jnp.float32)
    q_ref[...] = q
    pq_ref[...] = pq
    loss_ref[0, 0] = jnp.mean((q - x) ** 2) + jnp.mean((pq - p) ** 2)


def binary_quantize(feats, predicate_matrix):
    B, F = feats.shape
    C, F2 = predicate_matrix.shape
    assert F == F2
    q, pq, loss = pl.pallas_call(
        _bin_quantize_kernel,
        out_shape=(
            jax.ShapeDtypeStruct((B, F), jnp.float32),
            jax.ShapeDtypeStruct((C, F), jnp.float32),
            jax.ShapeDtypeStruct((1, 1), jnp.float32),
        ),
        in_specs=[
            pl.BlockSpec(memory_space=pltpu.MemorySpace.VMEM),
            pl.BlockSpec(memory_space=pltpu.MemorySpace.VMEM),
        ],
        out_specs=(
            pl.BlockSpec(memory_space=pltpu.MemorySpace.VMEM),
            pl.BlockSpec(memory_space=pltpu.MemorySpace.VMEM),
            pl.BlockSpec(memory_space=pltpu.MemorySpace.SMEM),
        ),
    )(feats.astype(jnp.float32), predicate_matrix.astype(jnp.float32))
    return q, loss[0, 0], pq


# ----------------------------------------------------------------------------
# VGG16-BN forward (NHWC bf16), plain-JAX glue around the Pallas kernels.
# ----------------------------------------------------------------------------
VGG16_CFG = [64, 64, 'M', 128, 128, 'M', 256, 256, 256, 'M',
             512, 512, 512, 'M', 512, 512, 512, 'M']


def _maxpool2x2(x):
    B, H, W, C = x.shape
    return x.reshape(B, H // 2, 2, W // 2, 2, C).max(axis=(2, 4))


def _adaptive_avg_pool(x, out=7):
    B, H, W, C = x.shape
    rows = []
    for i in range(out):
        h0, h1 = (i * H) // out, -(-((i + 1) * H) // out)
        cols = []
        for j in range(out):
            w0, w1 = (j * W) // out, -(-((j + 1) * W) // out)
            cols.append(x[:, h0:h1, w0:w1, :].astype(jnp.float32).mean(axis=(1, 2)))
        rows.append(jnp.stack(cols, axis=1))
    return jnp.stack(rows, axis=1)                       # (B, out, out, C) f32


def res_extr_forward(params, x, *, features):
    """x: (B, 3, H, W) NCHW float32 (same layout as the PyTorch module)."""
    B = x.shape[0]
    h = jnp.transpose(x, (0, 2, 3, 1)).astype(jnp.bfloat16)     # NHWC bf16
    ci = 0
    for v in VGG16_CFG:
        if v == 'M':
            h = _maxpool2x2(h)
        else:
            h = conv3x3_bn_relu(h, params['convs'][ci])
            ci += 1
    h = _adaptive_avg_pool(h, 7)                                 # (B, 7, 7, 512)
    h = jnp.transpose(h, (0, 3, 1, 2)).reshape(B, -1)            # torch flatten order
    # VGG classifier (dropout = identity, inference mode)
    h = linear(h, params['fc1'], relu=True, out_dtype=jnp.bfloat16)
    h = linear(h, params['fc2'], relu=True, out_dtype=jnp.bfloat16)
    h = linear(h, params['fc3'], relu=False, out_dtype=jnp.float32)
    feats = h[:, :features]                                      # (B, features)
    q, loss, pm = binary_quantize(feats, params['predicate_matrix'])
    return q, loss, pm


# ----------------------------------------------------------------------------
# Deterministic synthetic parameters, pre-packed once for the Pallas kernels.
# ----------------------------------------------------------------------------
def _pack_conv(w, b, gamma, beta, mean, var, eps=1e-5):
    """PyTorch-style (Cout, Cin, 3, 3) conv + BN(eval) -> packed bf16 params."""
    cout, cin = w.shape[0], w.shape[1]
    cin_p = cin if cin >= 64 else 64                    # keep the MXU K dim healthy
    s = gamma / jnp.sqrt(var + eps)                     # fold BN into the epilogue
    t = beta - mean * s + b * s
    w_hwio = jnp.transpose(w, (2, 3, 1, 0))             # (3, 3, Cin, Cout)
    w_p = jnp.zeros((3, 3, cin_p, cout), jnp.float32).at[:, :, :cin, :].set(w_hwio)
    return dict(w=w_p.reshape(9, cin_p, cout).astype(jnp.bfloat16),
                s=s.reshape(1, cout).astype(jnp.float32),
                t=t.reshape(1, cout).astype(jnp.float32))


def _pack_linear(w, b):
    K, N = w.shape
    Kp, Np = _round_up(K, 128), _round_up(N, 128)
    return dict(w=jnp.pad(w, ((0, Kp - K), (0, Np - N))).astype(jnp.bfloat16),
                b=jnp.pad(b, (0, Np - N)).reshape(1, Np).astype(jnp.float32))


def init_params(key, features, classes, in_ch=3):
    conv_cfg = [v for v in VGG16_CFG if v != 'M']
    keys = jax.random.split(key, len(conv_cfg) + 4)
    convs = []
    c = in_ch
    for i, v in enumerate(conv_cfg):
        fan_in = c * 9
        w = (jax.random.normal(keys[i], (v, c, 3, 3), jnp.float32)
             * jnp.sqrt(2.0 / fan_in))
        convs.append(_pack_conv(
            w, b=jnp.zeros((v,), jnp.float32),
            gamma=jnp.ones((v,), jnp.float32), beta=jnp.zeros((v,), jnp.float32),
            mean=jnp.zeros((v,), jnp.float32), var=jnp.ones((v,), jnp.float32)))
        c = v
    k1, k2, k3, kp = keys[len(conv_cfg):]
    params = dict(
        convs=convs,
        fc1=_pack_linear(jax.random.normal(k1, (512 * 7 * 7, 4096), jnp.float32)
                         * jnp.sqrt(1.0 / (512 * 7 * 7)),
                         jnp.zeros((4096,), jnp.float32)),
        fc2=_pack_linear(jax.random.normal(k2, (4096, 4096), jnp.float32)
                         * jnp.sqrt(1.0 / 4096), jnp.zeros((4096,), jnp.float32)),
        fc3=_pack_linear(jax.random.normal(k3, (4096, features), jnp.float32)
                         * jnp.sqrt(1.0 / 4096), jnp.zeros((features,), jnp.float32)),
        predicate_matrix=jax.random.normal(kp, (classes, features), jnp.float32),
    )
    return params


# ----------------------------------------------------------------------------
if __name__ == "__main__":
    key = jax.random.PRNGKey(0)
    features, classes = 32, 8
    B, H, W = 2, 32, 32

    kx, kparam, ka, kb, kc1, kc2 = jax.random.split(key, 6)
    params = init_params(kparam, features, classes)
    x = jax.random.normal(kx, (B, 3, H, W), jnp.float32)

    # --- sanity: Pallas linear kernel vs pure-JAX reference (bf16 operands) ---
    a = jax.random.normal(ka, (16, 200), jnp.float32)
    wt = jax.random.normal(kb, (200, 96), jnp.float32) * 0.1
    bias = jnp.linspace(-1.0, 1.0, 96, dtype=jnp.float32)
    p_lin = _pack_linear(wt, bias)
    got = linear(a, p_lin, relu=True, out_dtype=jnp.float32)[:, :96]
    want = jnp.maximum(
        jnp.dot(a.astype(jnp.bfloat16).astype(jnp.float32),
                wt.astype(jnp.bfloat16).astype(jnp.float32),
                precision=lax.Precision.HIGHEST) + bias, 0.0)
    assert bool(jnp.allclose(got, want, atol=2e-2, rtol=2e-2))

    # --- sanity: Pallas fused conv kernel vs lax.conv reference ---
    cin_t, cout_t, Ht, Wt = 16, 64, 8, 8
    wc = jax.random.normal(kc1, (cout_t, cin_t, 3, 3), jnp.float32) * 0.1
    gamma = jnp.linspace(0.8, 1.2, cout_t, dtype=jnp.float32)
    beta = jnp.linspace(-0.1, 0.1, cout_t, dtype=jnp.float32)
    mean = jnp.zeros((cout_t,), jnp.float32)
    var = jnp.ones((cout_t,), jnp.float32)
    cb = jnp.linspace(-0.05, 0.05, cout_t, dtype=jnp.float32)
    p_conv = _pack_conv(wc, cb, gamma, beta, mean, var)
    xc = jax.random.normal(kc2, (2, Ht, Wt, cin_t), jnp.float32)
    got_c = conv3x3_bn_relu(xc, p_conv).astype(jnp.float32)
    w_hwio = jnp.transpose(wc, (2, 3, 1, 0)).astype(jnp.bfloat16).astype(jnp.float32)
    ref_c = lax.conv_general_dilated(
        xc.astype(jnp.bfloat16).astype(jnp.float32), w_hwio, (1, 1), 'SAME',
        dimension_numbers=('NHWC', 'HWIO', 'NHWC'),
        precision=lax.Precision.HIGHEST)
    s_ref = gamma / jnp.sqrt(var + 1e-5)
    t_ref = beta - mean * s_ref + cb * s_ref
    ref_c = jnp.maximum(ref_c * s_ref + t_ref, 0.0)
    assert bool(jnp.allclose(got_c, ref_c, atol=5e-2, rtol=5e-2))

    # --- sanity: binary quantize kernel ---
    qc, lc, pqc = binary_quantize(a[:, :features], params['predicate_matrix'])
    want_q = jnp.where(a[:, :features] > 0.5, 1.0, 0.0)
    want_l = (jnp.mean((want_q - a[:, :features]) ** 2)
              + jnp.mean((jnp.where(params['predicate_matrix'] > 0.5, 1.0, 0.0)
                          - params['predicate_matrix']) ** 2))
    assert bool(jnp.allclose(qc, want_q)) and bool(jnp.allclose(lc, want_l, atol=1e-5))

    # --- full ResExtr forward (jitted) ---
    fwd = jax.jit(functools.partial(res_extr_forward, features=features))
    quantize, commit_loss, predicate_matrix = fwd(params, x)
    jax.block_until_ready((quantize, commit_loss, predicate_matrix))

    assert quantize.shape == (B, features)
    assert predicate_matrix.shape == (classes, features)
    assert commit_loss.shape == ()
    assert bool(jnp.all((quantize == 0.0) | (quantize == 1.0)))
    assert bool(jnp.all((predicate_matrix == 0.0) | (predicate_matrix == 1.0)))

    print("KERNEL_OK")
</pallas_src>

<mosaic_0001>
module attributes {stable_mosaic.version = 11 : i64} {
  func.func @_linear_bias_kernel(%arg0: i32, %arg1: i32, %arg2: i32, %arg3: memref<16x256xbf16, #tpu.memory_space<vmem>>, %arg4: memref<256x128xbf16, #tpu.memory_space<vmem>>, %arg5: memref<1x128xf32, #tpu.memory_space<vmem>>, %arg6: memref<16x128xf32, #tpu.memory_space<vmem>>, %arg7: memref<16x128xf32, #tpu.memory_space<vmem>>) attributes {dimension_semantics = [#tpu.dimension_semantics<parallel>, #tpu.dimension_semantics<parallel>, #tpu.dimension_semantics<arbitrary>], iteration_bounds = array<i64: 1, 1, 1>, scalar_prefetch = 0 : i64, scratch_operands = 1 : i64, tpu.core_type = #tpu.core_type<tc>, window_params = [{transform_indices = @transform_0, window_bounds = array<i64: 16, 256>}, {transform_indices = @transform_1, window_bounds = array<i64: 256, 128>}, {transform_indices = @transform_2, window_bounds = array<i64: 1, 128>}, {transform_indices = @transform_3, window_bounds = array<i64: 16, 128>}]} {
    %c0_i32 = arith.constant 0 : i32
    %0 = arith.cmpi eq, %arg2, %c0_i32 : i32
    %1 = arith.extui %0 : i1 to i32
    %c0_i32_0 = arith.constant 0 : i32
    %2 = arith.cmpi ne, %1, %c0_i32_0 : i32
    scf.if %2 {
      %cst_10 = arith.constant 0.000000e+00 : f32
      %12 = vector.broadcast %cst_10 : f32 to vector<16x128xf32>
      %c0_11 = arith.constant 0 : index
      %c0_12 = arith.constant 0 : index
      %13 = vector.load %arg7[%c0_11, %c0_12] : memref<16x128xf32, #tpu.memory_space<vmem>>, vector<16x128xf32>
      tpu.vector_store %arg7[%c0_11, %c0_12], %12 {strides = array<i32>} : memref<16x128xf32, #tpu.memory_space<vmem>>, vector<16x128xf32>,
    } else {
    }
    %c0 = arith.constant 0 : index
    %c0_1 = arith.constant 0 : index
    %3 = vector.load %arg7[%c0, %c0_1] : memref<16x128xf32, #tpu.memory_space<vmem>>, vector<16x128xf32>
    %c0_2 = arith.constant 0 : index
    %c0_3 = arith.constant 0 : index
    %4 = vector.load %arg3[%c0_2, %c0_3] : memref<16x256xbf16, #tpu.memory_space<vmem>>, vector<16x256xbf16>
    %c0_4 = arith.constant 0 : index
    %c0_5 = arith.constant 0 : index
    %5 = vector.load %arg4[%c0_4, %c0_5] : memref<256x128xbf16, #tpu.memory_space<vmem>>, vector<256x128xbf16>
    %cst = arith.constant dense<0.000000e+00> : vector<16x128xf32>
    %6 = tpu.matmul %4, %5, %cst {dimension_numbers = #tpu.dot_dimension_numbers<[1], [0], [0], [1], [0, 0, 1, 1], [], []>} : vector<16x256xbf16>, vector<256x128xbf16>, vector<16x128xf32> -> vector<16x128xf32>
    %7 = arith.addf %3, %6 : vector<16x128xf32>
    %c0_6 = arith.constant 0 : index
    %c0_7 = arith.constant 0 : index
    %8 = vector.load %arg7[%c0_6, %c0_7] : memref<16x128xf32, #tpu.memory_space<vmem>>, vector<16x128xf32>
    tpu.vector_store %arg7[%c0_6, %c0_7], %7 {strides = array<i32>} : memref<16x128xf32, #tpu.memory_space<vmem>>, vector<16x128xf32>,
    %c0_i32_8 = arith.constant 0 : i32
    %9 = arith.cmpi eq, %arg2, %c0_i32_8 : i32
    %10 = arith.extui %9 : i1 to i32
    %c0_i32_9 = arith.constant 0 : i32
    %11 = arith.cmpi ne, %10, %c0_i32_9 : i32
    scf.if %11 {
      %c0_10 = arith.constant 0 : index
      %c0_11 = arith.constant 0 : index
      %12 = vector.load %arg7[%c0_10, %c0_11] : memref<16x128xf32, #tpu.memory_space<vmem>>, vector<16x128xf32>
      %c0_12 = arith.constant 0 : index
      %c0_13 = arith.constant 0 : index
      %13 = vector.load %arg5[%c0_12, %c0_13] : memref<1x128xf32, #tpu.memory_space<vmem>>, vector<1x128xf32>
      %14 = vector.broadcast %13 : vector<1x128xf32> to vector<16x128xf32>
      %15 = arith.addf %12, %14 : vector<16x128xf32>
      %cst_14 = arith.constant 0.000000e+00 : f32
      %16 = vector.broadcast %cst_14 : f32 to vector<16x128xf32>
      %17 = arith.maximumf %15, %16 : vector<16x128xf32>
      %c0_15 = arith.constant 0 : index
      %c0_16 = arith.constant 0 : index
      %18 = vector.load %arg6[%c0_15, %c0_16] : memref<16x128xf32, #tpu.memory_space<vmem>>, vector<16x128xf32>
      tpu.vector_store %arg6[%c0_15, %c0_16], %17 {strides = array<i32>} : memref<16x128xf32, #tpu.memory_space<vmem>>, vector<16x128xf32>,
    } else {
    }
    return
  }
  func.func @transform_0(%arg0: i32, %arg1: i32, %arg2: i32) -> (i32, i32) {
    %c0_i32 = arith.constant 0 : i32
    return %arg0, %arg2 : i32, i32
  }
  func.func @transform_1(%arg0: i32, %arg1: i32, %arg2: i32) -> (i32, i32) {
    %c0_i32 = arith.constant 0 : i32
    return %arg2, %arg1 : i32, i32
  }
  func.func @transform_2(%arg0: i32, %arg1: i32, %arg2: i32) -> (i32, i32) {
    %c0_i32 = arith.constant 0 : i32
    %c0_i32_0 = arith.constant 0 : i32
    return %c0_i32, %arg1 : i32, i32
  }
  func.func @transform_3(%arg0: i32, %arg1: i32, %arg2: i32) -> (i32, i32) {
    %c0_i32 = arith.constant 0 : i32
    return %arg0, %arg1 : i32, i32
  }
}

</mosaic_0001>

<llo_original>
// kernel: tpu_custom_call.1
$region0: #{tpu_custom_call.1}
  #allocation0 [shape = 'u32[]', space=smem, size = 0x4, offset = 0x4, fixed_abs, tag = 'smem constant byte address 0x4 - core index']
  #allocation1 [shape = 'u32[144,128]{1,0:T(1,128)}', space=vmem, size = 0x12000, scoped, tag = 'internal scratch']
  #allocation2 [shape = 'f32[16,128]{1,0:T(8,128)}', space=vmem, size = 0x2000, scoped, tag = 'scratch operand']
  %s0 = inlined_call_operand.hbm [shape: bf16[16,256], index: 0, kind: input, shape index: {}]
  %s1 = inlined_call_operand.hbm [shape: bf16[256,128], index: 1, kind: input, shape index: {}]
  %s2 = inlined_call_operand.vmem [shape: f32[1,128], index: 2, kind: input, shape index: {}]
  %s3 = inlined_call_operand.hbm [shape: f32[16,128], index: 3, kind: output, shape index: {}]
  %s4 = sld [smem:[#allocation0]]
  $region38: #{tpu_custom_call.1} parent=0
    _
  %s6 = ssub.s32 1, %s4
  %s7 = scalar_select 0, %s6, %s4
  $region1: #{tpu_custom_call.1} parent=0
    #allocation3 [shape = 'u8[8192]{0}', space=vmem, size = 0x2000, scoped, tag = 'input window, operand 0, single buffered']
    #allocation4 [shape = 's32[1]{0}', space=sflag, size = 0x4, scoped, tag = 'scoped memory for tpu_custom_call.1']
    #allocation5 [shape = 's32[1]{0}', space=sflag, size = 0x4, scoped, tag = 'scoped memory for tpu_custom_call.1']
    #allocation6 [shape = 'u8[65536]{0}', space=vmem, size = 0x10000, scoped, tag = 'input window, operand 1, single buffered']
    #allocation7 [shape = 's32[1]{0}', space=sflag, size = 0x4, scoped, tag = 'scoped memory for tpu_custom_call.1']
    #allocation8 [shape = 'u8[8192]{0}', space=vmem, size = 0x2000, scoped, tag = 'output window, operand 0, single buffered']
    %8 = vsyncpa [#allocation4], 0
    %9 = vsyncpa [#allocation7], 0
    %10 = vsyncpa [#allocation5], 0
    // Predicated region
    $region2: #{tpu_custom_call.1} parent=1 // pred_check
      _
    $region3: #{tpu_custom_call.1} parent=1 // pred_check_branch
      %12 = sbr.rel (0) target = $region5
    $region4: #{tpu_custom_call.1} parent=1 // pred_region
      %s14 = ssub.s32 256, 256
      %15 = vsyncadd [#allocation4], %s14
      %s16 = sshll.u32 [#allocation3], 4
      %s17 = int_to_ptr.vmem [resolvable:$true] %s16
      %22 = dma.hbm_to_vmem [thread:$0]  %s0, 256, %s17, [#allocation4], 128, 128, 8
    $region5: #{tpu_custom_call.1} parent=1 // pred_fallthru
      _
    // Predicated region
    $region6: #{tpu_custom_call.1} parent=1 // pred_check
      _
    $region7: #{tpu_custom_call.1} parent=1 // pred_check_branch
      %24 = sbr.rel (0) target = $region9
    $region8: #{tpu_custom_call.1} parent=1 // pred_region
      %s26 = ssub.s32 2048, 2048
      %27 = vsyncadd [#allocation7], %s26
      %s28 = sshll.u32 [#allocation6], 4
      %s29 = int_to_ptr.vmem [resolvable:$true] %s28
      %34 = dma.hbm_to_vmem [thread:$0]  %s1, 2048, %s29, [#allocation7], 64, 64, 4
    $region9: #{tpu_custom_call.1} parent=1 // pred_fallthru
      _
    // Predicated region
    $region10: #{tpu_custom_call.1} parent=1 // pred_check
      _
    $region11: #{tpu_custom_call.1} parent=1 // pred_check_branch
      %36 = sbr.rel (0) target = $region13
    $region12: #{tpu_custom_call.1} parent=1 // pred_region
      _
    $region13: #{tpu_custom_call.1} parent=1 // pred_fallthru
      _
    // Predicated region
    $region14: #{tpu_custom_call.1} parent=1 // pred_check
      _
    $region15: #{tpu_custom_call.1} parent=1 // pred_check_branch
      %38 = sbr.rel (0) target = $region17
    $region16: #{tpu_custom_call.1} parent=1 // pred_region
      %39 = dma.done [#allocation4], 256
    $region17: #{tpu_custom_call.1} parent=1 // pred_fallthru
      _
    // Predicated region
    $region18: #{tpu_custom_call.1} parent=1 // pred_check
      _
    $region19: #{tpu_custom_call.1} parent=1 // pred_check_branch
      %41 = sbr.rel (0) target = $region21
    $region20: #{tpu_custom_call.1} parent=1 // pred_region
      %42 = dma.done [#allocation7], 2048
    $region21: #{tpu_custom_call.1} parent=1 // pred_fallthru
      _
    %p44 = scmp.eq.s32.totalorder 0, 0
    // Predicated region
    $region22: #{tpu_custom_call.1} parent=1 // pred_check
      %p45 = pneg %p44
    $region23: #{tpu_custom_call.1} parent=1 // pred_check_branch
      %47 = sbr.rel (%p45) target = $region25
    $region24: #{tpu_custom_call.1} parent=1 // pred_region
      %48 = vst [vmem:[#allocation2] sm:$0xff] 0.0
      %49 = vst [vmem:[#allocation2 + $0x8] sm:$0xff] 0.0
    $region25: #{tpu_custom_call.1} parent=1 // pred_fallthru
      _
    %v50 = vld [vmem:[#allocation2] sm:$0xff]
    %v51 = vld [vmem:[#allocation2 + $0x8] sm:$0xff]
    %v52 = vld [vmem:[#allocation3] sm:$0xff]
    %v53 = vld [vmem:[#allocation3 + $0x8] sm:$0xff]
    %v54 = vld [vmem:[#allocation6] sm:$0xf]
    %v55 = vld [vmem:[#allocation6 + $0x4] sm:$0xf]
    %v56 = vld [vmem:[#allocation6 + $0x8] sm:$0xf]
    %v57 = vld [vmem:[#allocation6 + $0xc] sm:$0xf]
    %v58 = vld [vmem:[#allocation6 + $0x10] sm:$0xf]
    %v59 = vld [vmem:[#allocation6 + $0x14] sm:$0xf]
    %v60 = vld [vmem:[#allocation6 + $0x18] sm:$0xf]
    %v61 = vld [vmem:[#allocation6 + $0x1c] sm:$0xf]
    %v62 = vld [vmem:[#allocation6 + $0x20] sm:$0xf]
    %v63 = vld [vmem:[#allocation6 + $0x24] sm:$0xf]
    %v64 = vld [vmem:[#allocation6 + $0x28] sm:$0xf]
    %v65 = vld [vmem:[#allocation6 + $0x2c] sm:$0xf]
    %v66 = vld [vmem:[#allocation6 + $0x30] sm:$0xf]
    %v67 = vld [vmem:[#allocation6 + $0x34] sm:$0xf]
    %v68 = vld [vmem:[#allocation6 + $0x38] sm:$0xf]
    %v69 = vld [vmem:[#allocation6 + $0x3c] sm:$0xf]
    %v70 = vld [vmem:[#allocation6 + $0x40] sm:$0xf]
    %v71 = vld [vmem:[#allocation6 + $0x44] sm:$0xf]
    %v72 = vld [vmem:[#allocation6 + $0x48] sm:$0xf]
    %v73 = vld [vmem:[#allocation6 + $0x4c] sm:$0xf]
    %v74 = vld [vmem:[#allocation6 + $0x50] sm:$0xf]
    %v75 = vld [vmem:[#allocation6 + $0x54] sm:$0xf]
    %v76 = vld [vmem:[#allocation6 + $0x58] sm:$0xf]
    %v77 = vld [vmem:[#allocation6 + $0x5c] sm:$0xf]
    %v78 = vld [vmem:[#allocation6 + $0x60] sm:$0xf]
    %v79 = vld [vmem:[#allocation6 + $0x64] sm:$0xf]
    %v80 = vld [vmem:[#allocation6 + $0x68] sm:$0xf]
    %v81 = vld [vmem:[#allocation6 + $0x6c] sm:$0xf]
    %v82 = vld [vmem:[#allocation6 + $0x70] sm:$0xf]
    %v83 = vld [vmem:[#allocation6 + $0x74] sm:$0xf]
    %v84 = vld [vmem:[#allocation6 + $0x78] sm:$0xf]
    %v85 = vld [vmem:[#allocation6 + $0x7c] sm:$0xf]
    %v88 = vunpack.c.l.b16 %v52
    %v89 = vunpack.c.h.b16 %v52
    %v90 = vunpack.c.l.b16 %v53
    %v91 = vunpack.c.h.b16 %v53
    %v92 = vpack.c.b16 %v90, %v88
    %v93 = vpack.c.b16 %v91, %v89
    %v128 = vunpack.c.l.b16 %v54
    %v129 = vunpack.c.l.b16 %v55
    %v130 = vunpack.c.l.b16 %v56
    %v131 = vunpack.c.l.b16 %v57
    %v132 = vunpack.c.l.b16 %v58
    %v133 = vunpack.c.l.b16 %v59
    %v134 = vunpack.c.l.b16 %v60
    %v135 = vunpack.c.l.b16 %v61
    %v136 = vunpack.c.l.b16 %v62
    %v137 = vunpack.c.l.b16 %v63
    %v138 = vunpack.c.l.b16 %v64
    %v139 = vunpack.c.l.b16 %v65
    %v140 = vunpack.c.l.b16 %v66
    %v141 = vunpack.c.l.b16 %v67
    %v142 = vunpack.c.l.b16 %v68
    %v143 = vunpack.c.l.b16 %v69
    %v144 = vunpack.c.l.b16 %v70
    %v145 = vunpack.c.l.b16 %v71
    %v146 = vunpack.c.l.b16 %v72
    %v147 = vunpack.c.l.b16 %v73
    %v148 = vunpack.c.l.b16 %v74
    %v149 = vunpack.c.l.b16 %v75
    %v150 = vunpack.c.l.b16 %v76
    %v151 = vunpack.c.l.b16 %v77
    %v152 = vunpack.c.l.b16 %v78
    %v153 = vunpack.c.l.b16 %v79
    %v154 = vunpack.c.l.b16 %v80
    %v155 = vunpack.c.l.b16 %v81
    %v156 = vunpack.c.l.b16 %v82
    %v157 = vunpack.c.l.b16 %v83
    %v158 = vunpack.c.l.b16 %v84
    %v159 = vunpack.c.l.b16 %v85
    %v160 = vpack.c.b16 %v129, %v128
    %v161 = vpack.c.b16 %v131, %v130
    %v162 = vpack.c.b16 %v133, %v132
    %v163 = vpack.c.b16 %v135, %v134
    %v164 = vpack.c.b16 %v137, %v136
    %v165 = vpack.c.b16 %v139, %v138
    %v166 = vpack.c.b16 %v141, %v140
    %v167 = vpack.c.b16 %v143, %v142
    %v168 = vpack.c.b16 %v145, %v144
    %v169 = vpack.c.b16 %v147, %v146
    %v170 = vpack.c.b16 %v149, %v148
    %v171 = vpack.c.b16 %v151, %v150
    %v172 = vpack.c.b16 %v153, %v152
    %v173 = vpack.c.b16 %v155, %v154
    %v174 = vpack.c.b16 %v157, %v156
    %v175 = vpack.c.b16 %v159, %v158
    %192 = vmatprep.subr.bf16.mxu0 0
    %193 = vmatpush1.bf16.msra.mxu0 %v160
    %194 = vmatprep.subr.bf16.mxu0 0
    %195 = vmatpush1.bf16.msra.mxu0 %v161
    %196 = vmatprep.subr.bf16.mxu0 0
    %197 = vmatpush1.bf16.msra.mxu0 %v162
    %198 = vmatprep.subr.bf16.mxu0 0
    %199 = vmatpush1.bf16.msra.mxu0 %v163
    %200 = vmatprep.subr.bf16.mxu0 0
    %201 = vmatpush1.bf16.msra.mxu0 %v164
    %202 = vmatprep.subr.bf16.mxu0 0
    %203 = vmatpush1.bf16.msra.mxu0 %v165
    %204 = vmatprep.subr.bf16.mxu0 0
    %205 = vmatpush1.bf16.msra.mxu0 %v166
    %206 = vmatprep.subr.bf16.mxu0 0
    %207 = vmatpush1.bf16.msra.mxu0 %v167
    %208 = vmatprep.subr.bf16.mxu0 0
    %209 = vmatpush1.bf16.msra.mxu0 %v168
    %210 = vmatprep.subr.bf16.mxu0 0
    %211 = vmatpush1.bf16.msra.mxu0 %v169
    %212 = vmatprep.subr.bf16.mxu0 0
    %213 = vmatpush1.bf16.msra.mxu0 %v170
    %214 = vmatprep.subr.bf16.mxu0 0
    %215 = vmatpush1.bf16.msra.mxu0 %v171
    %216 = vmatprep.subr.bf16.mxu0 0
    %217 = vmatpush1.bf16.msra.mxu0 %v172
    %218 = vmatprep.subr.bf16.mxu0 0
    %219 = vmatpush1.bf16.msra.mxu0 %v173
    %220 = vmatprep.subr.bf16.mxu0 0
    %221 = vmatpush1.bf16.msra.mxu0 %v174
    %222 = vmatprep.subr.bf16.mxu0 0
    %223 = vmatpush1.bf16.msra.mxu0 %v175
    %224 = vmatprep.mubr.bf16.mxu0 %v93
    %225 = vmatmul.mubr.bf16.gmra.mrb[0].mxu0 %v92
    %v226 = vpop.f32.mrb[0].mxu0
    %v227 = vadd.f32 0.0, %v226
    %v228 = vpop.f32.mrb[0].mxu0
    %v229 = vpop.f32.mrb[0].mxu0
    %v230 = vadd.f32 0.0, %v229
    %v231 = vpop.f32.mrb[0].mxu0
    %232 = vdwg.mxu0
    %v233 = vadd.f32 %v50, %v227
    %v234 = vadd.f32 %v51, %v230
    %235 = vst [vmem:[#allocation2] sm:$0xff] %v233
    %236 = vst [vmem:[#allocation2 + $0x8] sm:$0xff] %v234
    // Predicated region
    $region26: #{tpu_custom_call.1} parent=1 // pred_check
      %p237 = pneg %p44
    $region27: #{tpu_custom_call.1} parent=1 // pred_check_branch
      %239 = sbr.rel (%p237) target = $region29
    $region28: #{tpu_custom_call.1} parent=1 // pred_region
      %v240 = vld [vmem:[#allocation2] sm:$0xff]
      %v241 = vld [vmem:[#allocation2 + $0x8] sm:$0xff]
      %v242 = vld [vmem:[%s2] sm:$0x1]
      %v244 = vlaneseq
      %v245 = vshrl.u32 %v244, 7
      %v246 = vsub.s32 0, %v245
      %v247 = vrot.slane %v242, %v246
      %v249 = vadd.f32 %v240, %v247
      %v250 = vadd.f32 %v241, %v247
      %v251 = vmax.f32 %v249, 0.0
      %v252 = vmax.f32 %v250, 0.0
      %253 = vst [vmem:[#allocation8] sm:$0xff] %v251
      %254 = vst [vmem:[#allocation8 + $0x8] sm:$0xff] %v252
    $region29: #{tpu_custom_call.1} parent=1 // pred_fallthru
      _
    // Predicated region
    $region30: #{tpu_custom_call.1} parent=1 // pred_check
      _
    $region31: #{tpu_custom_call.1} parent=1 // pred_check_branch
      %256 = sbr.rel (0) target = $region33
    $region32: #{tpu_custom_call.1} parent=1 // pred_region
      %s258 = ssub.s32 256, 256
      %259 = vsyncadd [#allocation5], %s258
      %s260 = sshll.u32 [#allocation8], 4
      %s261 = int_to_ptr.vmem [resolvable:$true] %s260
      %266 = dma.vmem_to_hbm [thread:$0]  %s261, 256, %s3, [#allocation5], 128, 128, 8
    $region33: #{tpu_custom_call.1} parent=1 // pred_fallthru
      _
    // Predicated region
    $region34: #{tpu_custom_call.1} parent=1 // pred_check
      _
    $region35: #{tpu_custom_call.1} parent=1 // pred_check_branch
      %268 = sbr.rel (0) target = $region37
    $region36: #{tpu_custom_call.1} parent=1 // pred_region
      %269 = dma.done [#allocation5], 256
    $region37: #{tpu_custom_call.1} parent=1 // pred_fallthru
      _
    %270 = vsyncpa [#allocation4], 1
    %271 = vsyncpa [#allocation7], 1
    %272 = vsyncpa [#allocation5], 1

</llo_original>
